<compile_context>
chip_gen: v7x
topology: tpu7x:2x2x1
jax: 0.10.0
libtpu: 0.0.40
codegen_flags: <defaults>
</compile_context>

<pallas_src>
import functools

import jax
import jax.numpy as jnp
import numpy as np
from jax.experimental import pallas as pl
from jax.experimental.pallas import tpu as pltpu


def _residual_block_kernel(xp_ref, w1_ref, w2_ref, mask_ref, o_ref, slab_ref, *,
                           hpwp, wp, eps, count, roll_like_jnp):
    """Fused ResidualBlock forward for ONE sample.

    xp_ref:   [C, Rs] f32. Zero-padded input, padded (d, h, w) grid flattened
              onto lanes (column (d*Hp + h)*Wp + w); columns >= Dp*Hp*Wp are 0.
    w1_ref:   [C, 27*C] bf16, w1_ref[co, t*C + ci] = W1[co, ci, kd, kh, kw],
              t = kd*9 + kh*3 + kw.
    w2_ref:   [C, 27*C] bf16, same packing.
    mask_ref: [1, Rs] f32, 1.0 at valid conv-output columns (od<D, oh<H, ow<W).
    o_ref:    [C, Rs] f32 output on the same flattened padded grid (garbage at
              non-valid columns; the wrapper slices them away).
    slab_ref: [27*C, Rs] f32 VMEM scratch holding the im2col slab.
    """
    C, Rs = o_ref.shape
    s0 = hpwp + wp + 1                      # flat offset of padded pos (1,1,1)

    def shift_cols(v, delta):
        # u[:, j] = v[:, (j + delta) mod Rs]
        amt = ((-delta) % Rs) if roll_like_jnp else (delta % Rs)
        if amt == 0:
            return v
        return pltpu.roll(v, amt, axis=1)

    def conv3x3x3(src, w_ref):
        # src: [C, Rs] f32 zero-padded activation.  3D VALID conv on the padded
        # grid as ONE im2col matmul: tap (kd,kh,kw) <-> lane shift
        # kd*Hp*Wp + kh*Wp + kw.  The 27 shifted slabs are stacked along
        # sublanes (tile-aligned f32 stores), then contracted in a single
        # [C, 27C] x [27C, Rs] bf16 MXU matmul with f32 accumulation.
        idx = 0
        for kd in range(3):
            for kh in range(3):
                for kw in range(3):
                    s = kd * hpwp + kh * wp + kw
                    slab_ref[idx * C:(idx + 1) * C, :] = shift_cols(src, s)
                    idx += 1
        return jnp.dot(w_ref[...], slab_ref[...].astype(jnp.bfloat16),
                       preferred_element_type=jnp.float32)

    mask = mask_ref[...]                    # [1, Rs] in {0, 1}
    inv_cnt = 1.0 / count

    def instance_norm(y):
        # Per-channel InstanceNorm (affine=False, biased variance, like torch)
        # over the `count` valid columns.  Two-pass / mean-centred, all f32.
        # Output is masked to zero at padding / garbage columns.
        mean = jnp.sum(y * mask, axis=1, keepdims=True) * inv_cnt      # [C, 1]
        centered = (y - mean) * mask
        var = jnp.sum(centered * centered, axis=1, keepdims=True) * inv_cnt
        return centered * jax.lax.rsqrt(var + eps)

    x_flat = xp_ref[...]                    # [C, Rs] f32

    # conv1 -> InstanceNorm -> ReLU   (conv bias omitted: cancelled by the norm)
    h = jnp.maximum(instance_norm(conv3x3x3(x_flat, w1_ref)), 0.0)

    # Re-pad for conv2: shifting the masked (hence zero outside valid columns)
    # activation by +s0 places value (od, oh, ow) at padded position
    # (od+1, oh+1, ow+1); wrapped-around / boundary columns are all masked zeros.
    xp2 = shift_cols(h, -s0)

    # conv2 -> InstanceNorm
    g = instance_norm(conv3x3x3(xp2, w2_ref))

    # Residual: original x for output column j sits at padded column j + s0.
    o_ref[...] = g + shift_cols(x_flat, s0)


def residual_block_forward(x, w1, w2, *, eps=1e-5, roll_like_jnp=True):
    """x: (N, C, D, H, W) f32; w1, w2: (C, C, 3, 3, 3) f32 -> (N, C, D, H, W)."""
    N, C, D, H, W = x.shape
    Dp, Hp, Wp = D + 2, H + 2, W + 2
    Rp = Dp * Hp * Wp                        # padded grid size per sample
    Rs = ((Rp + 127) // 128) * 128           # lane-dense per-sample stripe

    # Layout plumbing: zero-pad spatially, flatten the padded grid onto lanes,
    # zero tail columns.  No transposes needed with the (N, C, Rs) layout.
    xp = jnp.pad(x, ((0, 0), (0, 0), (1, 1), (1, 1), (1, 1))).reshape(N, C, Rp)
    xp = jnp.pad(xp, ((0, 0), (0, 0), (0, Rs - Rp)))

    # Validity mask over the flattened padded grid (static, shared by samples).
    base = np.zeros((Dp, Hp, Wp), np.float32)
    base[:D, :H, :W] = 1.0
    mask_np = np.zeros((1, Rs), np.float32)
    mask_np[0, :Rp] = base.reshape(-1)
    mask = jnp.asarray(mask_np)

    # Weights: (C_out, C_in, kd, kh, kw) -> lane-dense [C_out, 27*C_in] bf16,
    # K index = (kd*9 + kh*3 + kw)*C_in + ci (must match the slab stacking).
    def pack_w(w):
        return jnp.transpose(w, (0, 2, 3, 4, 1)).reshape(C, 27 * C).astype(jnp.bfloat16)

    kernel = functools.partial(
        _residual_block_kernel,
        hpwp=Hp * Wp, wp=Wp, eps=eps, count=float(D * H * W),
        roll_like_jnp=roll_like_jnp)

    out_flat = pl.pallas_call(
        kernel,
        grid=(N,),
        in_specs=[pl.BlockSpec((None, C, Rs), lambda n: (n, 0, 0)),
                  pl.BlockSpec((C, 27 * C), lambda n: (0, 0)),
                  pl.BlockSpec((C, 27 * C), lambda n: (0, 0)),
                  pl.BlockSpec((1, Rs), lambda n: (0, 0))],
        out_specs=pl.BlockSpec((None, C, Rs), lambda n: (n, 0, 0)),
        out_shape=jax.ShapeDtypeStruct((N, C, Rs), jnp.float32),
        scratch_shapes=[pltpu.VMEM((27 * C, Rs), jnp.float32)],
        compiler_params=pltpu.CompilerParams(
            dimension_semantics=("parallel",)),
    )(xp, pack_w(w1), pack_w(w2), mask)

    # Back to NCDHW; drop the padded-grid garbage columns.
    out = out_flat[:, :, :Rp].reshape(N, C, Dp, Hp, Wp)[:, :, :D, :H, :W]
    return out


@functools.lru_cache(maxsize=None)
def _roll_matches_jnp():
    """pltpu.roll is expected to match jnp.roll; verify the rotation direction
    ONCE (memoized) so the kernel's static shift amounts get the right sign."""
    def k(x_ref, o_ref):
        o_ref[...] = pltpu.roll(x_ref[...], 1, axis=1)

    x = jnp.tile(jnp.arange(128, dtype=jnp.float32)[None, :], (8, 1))
    y = pl.pallas_call(k, out_shape=jax.ShapeDtypeStruct((8, 128), jnp.float32))(x)
    y_np = np.asarray(jax.device_get(y))
    return bool(np.array_equal(y_np, np.roll(np.asarray(jax.device_get(x)), 1, axis=1)))


def residual_block_reference(x, w1, w2, *, eps=1e-5):
    """Pure-JAX reference of the PyTorch forward.  Conv operands are rounded to
    bf16 exactly like the kernel's MXU operands (accumulation stays f32), so the
    comparison isolates structural correctness from dtype rounding."""
    def bf16_round(a):
        return a.astype(jnp.bfloat16).astype(jnp.float32)

    def conv(inp, w):
        return jax.lax.conv_general_dilated(
            bf16_round(inp), bf16_round(w), window_strides=(1, 1, 1),
            padding="VALID", dimension_numbers=("NCDHW", "OIDHW", "NCDHW"),
            precision=jax.lax.Precision.HIGHEST)

    def inorm(y):
        mean = jnp.mean(y, axis=(2, 3, 4), keepdims=True)
        var = jnp.var(y, axis=(2, 3, 4), keepdims=True)      # biased, like torch
        return (y - mean) * jax.lax.rsqrt(var + eps)

    pad = ((0, 0), (0, 0), (1, 1), (1, 1), (1, 1))
    h = jax.nn.relu(inorm(conv(jnp.pad(x, pad), w1)))
    y = inorm(conv(jnp.pad(h, pad), w2))
    return x + y


if __name__ == "__main__":
    key = jax.random.PRNGKey(0)
    kx, k1, k2 = jax.random.split(key, 3)

    batch, features, size = 2, 8, 8                 # x: (2, 8, 8, 8, 8)
    x = jax.random.normal(kx, (batch, features, size, size, size), jnp.float32)

    # nn.Conv3d default init: U(-1/sqrt(fan_in), 1/sqrt(fan_in)).  Biases are
    # omitted: they are exactly cancelled by the affine-free InstanceNorm.
    fan_in = features * 27
    bound = 1.0 / (fan_in ** 0.5)
    w1 = jax.random.uniform(k1, (features, features, 3, 3, 3), jnp.float32, -bound, bound)
    w2 = jax.random.uniform(k2, (features, features, 3, 3, 3), jnp.float32, -bound, bound)

    fwd = jax.jit(functools.partial(residual_block_forward,
                                    roll_like_jnp=_roll_matches_jnp()))
    out = jax.block_until_ready(fwd(x, w1, w2))

    ref = residual_block_reference(x, w1, w2)
    err = float(jnp.max(jnp.abs(out - ref)))
    assert out.shape == x.shape, out.shape
    assert err < 5e-3, f"max |kernel - reference| = {err}"
    print("KERNEL_OK")
</pallas_src>

<mosaic_0001>
module attributes {stable_mosaic.version = 11 : i64} {
  func.func @k(%arg0: memref<8x128xf32, #tpu.memory_space<vmem>>, %arg1: memref<8x128xf32, #tpu.memory_space<vmem>>) attributes {dimension_semantics = [], scalar_prefetch = 0 : i64, scratch_operands = 0 : i64, tpu.core_type = #tpu.core_type<tc>} {
    %c0 = arith.constant 0 : index
    %c0_0 = arith.constant 0 : index
    %0 = vector.load %arg0[%c0, %c0_0] : memref<8x128xf32, #tpu.memory_space<vmem>>, vector<8x128xf32>
    %c1_i32 = arith.constant 1 : i32
    %1 = tpu.dynamic_rotate %0 by %c1_i32 dim 1 : vector<8x128xf32>, i32 -> vector<8x128xf32>
    %c0_1 = arith.constant 0 : index
    %c0_2 = arith.constant 0 : index
    %2 = vector.load %arg1[%c0_1, %c0_2] : memref<8x128xf32, #tpu.memory_space<vmem>>, vector<8x128xf32>
    tpu.vector_store %arg1[%c0_1, %c0_2], %1 {strides = array<i32>} : memref<8x128xf32, #tpu.memory_space<vmem>>, vector<8x128xf32>,
    return
  }
}

</mosaic_0001>

<llo_original>
// kernel: tpu_custom_call.1
$region0: #{tpu_custom_call.1}
  #allocation0 [shape = 'u32[]', space=smem, size = 0x4, offset = 0x4, fixed_abs, tag = 'smem constant byte address 0x4 - core index']
  #allocation1 [shape = 'u32[144,128]{1,0:T(1,128)}', space=vmem, size = 0x12000, scoped, tag = 'internal scratch']
  %s0 = inlined_call_operand.hbm [shape: f32[8,128], index: 0, kind: input, shape index: {}]
  %s1 = inlined_call_operand.hbm [shape: f32[8,128], index: 1, kind: output, shape index: {}]
  %s2 = sld [smem:[#allocation0]]
  $region18: #{tpu_custom_call.1} parent=0
    _
  %s4 = ssub.s32 1, %s2
  %s5 = scalar_select 0, %s4, %s2
  $region1: #{tpu_custom_call.1} parent=0
    #allocation2 [shape = 'u8[4096]{0}', space=vmem, size = 0x1000, scoped, tag = 'input window, operand 0, single buffered']
    #allocation3 [shape = 's32[1]{0}', space=sflag, size = 0x4, scoped, tag = 'scoped memory for tpu_custom_call.1']
    #allocation4 [shape = 's32[1]{0}', space=sflag, size = 0x4, scoped, tag = 'scoped memory for tpu_custom_call.1']
    #allocation5 [shape = 'u8[4096]{0}', space=vmem, size = 0x1000, scoped, tag = 'output window, operand 0, single buffered']
    %6 = vsyncpa [#allocation3], 0
    %7 = vsyncpa [#allocation4], 0
    // Predicated region
    $region2: #{tpu_custom_call.1} parent=1 // pred_check
      _
    $region3: #{tpu_custom_call.1} parent=1 // pred_check_branch
      %9 = sbr.rel (0) target = $region5
    $region4: #{tpu_custom_call.1} parent=1 // pred_region
      %s11 = ssub.s32 128, 128
      %12 = vsyncadd [#allocation3], %s11
      %s14 = sshll.u32 [#allocation2], 4
      %s15 = int_to_ptr.vmem [resolvable:$true] %s14
      %17 = dma.hbm_to_vmem [thread:$0]  %s0, 128, %s15, [#allocation3]
    $region5: #{tpu_custom_call.1} parent=1 // pred_fallthru
      _
    // Predicated region
    $region6: #{tpu_custom_call.1} parent=1 // pred_check
      _
    $region7: #{tpu_custom_call.1} parent=1 // pred_check_branch
      %19 = sbr.rel (0) target = $region9
    $region8: #{tpu_custom_call.1} parent=1 // pred_region
      %20 = dma.done [#allocation3], 128
    $region9: #{tpu_custom_call.1} parent=1 // pred_fallthru
      _
    %v21 = vld [vmem:[#allocation2] sm:$0xff]
    %22 = vrot.lane.b32.xlu0 %v21, 1
    %v23 = vpop.permute.xlu0 %22
    %24 = vst [vmem:[#allocation5] sm:$0xff] %v23
    // Predicated region
    $region10: #{tpu_custom_call.1} parent=1 // pred_check
      _
    $region11: #{tpu_custom_call.1} parent=1 // pred_check_branch
      %26 = sbr.rel (0) target = $region13
    $region12: #{tpu_custom_call.1} parent=1 // pred_region
      %s28 = ssub.s32 128, 128
      %29 = vsyncadd [#allocation4], %s28
      %s31 = sshll.u32 [#allocation5], 4
      %s32 = int_to_ptr.vmem [resolvable:$true] %s31
      %34 = dma.vmem_to_hbm [thread:$0]  %s32, 128, %s1, [#allocation4]
    $region13: #{tpu_custom_call.1} parent=1 // pred_fallthru
      _
    // Predicated region
    $region14: #{tpu_custom_call.1} parent=1 // pred_check
      _
    $region15: #{tpu_custom_call.1} parent=1 // pred_check_branch
      %36 = sbr.rel (0) target = $region17
    $region16: #{tpu_custom_call.1} parent=1 // pred_region
      %37 = dma.done [#allocation4], 128
    $region17: #{tpu_custom_call.1} parent=1 // pred_fallthru
      _
    %38 = vsyncpa [#allocation3], 1
    %39 = vsyncpa [#allocation4], 1

</llo_original>
